<compile_context>
chip_gen: v6e
topology: v6e:2x2x1
jax: 0.10.0
libtpu: 0.0.40
codegen_flags: <defaults>
</compile_context>

<pallas_src>
import functools

import jax
import jax.numpy as jnp
from jax.experimental import pallas as pl
from jax.experimental.pallas import tpu as pltpu


def _round_up(a, b):
    return (a + b - 1) // b * b


def ffn_kernel(x_ref, w1_ref, b1_ref, w2_ref, b2_ref, gamma_ref, beta_ref,
               o_ref, acc_ref, *, eps, d_in_real):
    """One (tm, d_in_p) row tile; grid axis 1 walks d_hid chunks (reduction)."""
    k = pl.program_id(1)
    nk = pl.num_programs(1)

    @pl.when(k == 0)
    def _():
        acc_ref[...] = jnp.zeros_like(acc_ref)

    # First matmul + ReLU on this hidden chunk. Operands stay in their native dtype
    # (bf16 goes straight to the MXU); accumulation is f32.
    x = x_ref[...]
    h = jnp.dot(x, w1_ref[...], preferred_element_type=jnp.float32)
    h = jnp.maximum(h + b1_ref[...].astype(jnp.float32), 0.0)

    # Second matmul: accumulate this chunk's (tm, d_in_p) contribution in f32 scratch.
    acc_ref[...] += jnp.dot(h.astype(w2_ref.dtype), w2_ref[...],
                            preferred_element_type=jnp.float32)

    @pl.when(k == nk - 1)
    def _():
        # dropout == identity (inference); residual add; LayerNorm(eps) over the real d_in.
        y = (acc_ref[...] + b2_ref[...].astype(jnp.float32)
             + x_ref[...].astype(jnp.float32))
        d_pad = y.shape[-1]
        inv_d = 1.0 / d_in_real
        if d_in_real != d_pad:                      # static: only when feature dim was padded
            lane = jax.lax.broadcasted_iota(jnp.int32, y.shape, 1)
            mask = lane < d_in_real
            y = jnp.where(mask, y, 0.0)
        mean = jnp.sum(y, axis=-1, keepdims=True) * inv_d
        c = y - mean
        if d_in_real != d_pad:
            c = jnp.where(mask, c, 0.0)
        var = jnp.sum(c * c, axis=-1, keepdims=True) * inv_d
        out = c * jax.lax.rsqrt(var + eps)
        out = out * gamma_ref[...].astype(jnp.float32) + beta_ref[...].astype(jnp.float32)
        o_ref[...] = out.astype(o_ref.dtype)


def _choose_tiles(m, d_in_p, d_hid_p, x_bytes, w_bytes, out_bytes,
                  vmem_budget=36 * 1024 * 1024):
    """Pick (row tile, hidden chunk) sized against a VMEM budget (v7x-safe)."""
    # Hidden chunk: largest 128-multiple divisor of d_hid_p, capped at 1024.
    if d_hid_p <= 1024:
        tk = d_hid_p
    else:
        tk = 128
        for cand in (1024, 512, 256):
            if d_hid_p % cand == 0:
                tk = cand
                break

    # Working-set estimate: weight chunks (double-buffered) + per-row buffers.
    fixed = 2 * (d_in_p * tk + tk * d_in_p) * w_bytes + 16 * (d_in_p + tk) * 4
    per_row = d_in_p * (2 * x_bytes + 2 * out_bytes + 4) + tk * 4   # x/out dbl-buf + acc + h
    tm_cap = (vmem_budget - fixed) // per_row
    tm_cap = int(max(8, min(tm_cap, 1024)))

    m8 = _round_up(m, 8)
    if m8 <= min(tm_cap, 512):
        tm = m8                                            # whole problem in one row tile
    else:
        target = max(256, _round_up(-(-m // 2), 256))      # >=2 row tiles (megacore)
        tm = min(tm_cap, target)
        tm = (tm // 256) * 256 if tm >= 256 else max((tm // 8) * 8, 8)
    return tm, tk


def positionwise_feed_forward(x, w1, b1, w2, b2, gamma, beta, *, eps=1e-6):
    """x: (..., d_in). w1: (d_in, d_hid), w2: (d_hid, d_in) (PyTorch Linear weights transposed)."""
    orig_shape = x.shape
    d_in = orig_shape[-1]
    d_hid = w1.shape[1]
    d_in_p = _round_up(d_in, 128)     # lane-dense feature dim (unmasked stores)
    d_hid_p = _round_up(d_hid, 128)

    x2d = x.reshape(-1, d_in)
    m = x2d.shape[0]

    # Zero-pad feature / hidden dims to 128 multiples (no-op when already aligned).
    if d_in_p != d_in:
        x2d = jnp.pad(x2d, ((0, 0), (0, d_in_p - d_in)))
    w1p = jnp.pad(w1, ((0, d_in_p - d_in), (0, d_hid_p - d_hid)))
    b1p = jnp.pad(b1, (0, d_hid_p - d_hid)).reshape(1, d_hid_p)
    w2p = jnp.pad(w2, ((0, d_hid_p - d_hid), (0, d_in_p - d_in)))
    b2p = jnp.pad(b2, (0, d_in_p - d_in)).reshape(1, d_in_p)
    gammap = jnp.pad(gamma, (0, d_in_p - d_in)).reshape(1, d_in_p)
    betap = jnp.pad(beta, (0, d_in_p - d_in)).reshape(1, d_in_p)

    tm, tk = _choose_tiles(m, d_in_p, d_hid_p,
                           x2d.dtype.itemsize, w1p.dtype.itemsize, x.dtype.itemsize)
    grid_m = -(-m // tm)              # ragged last row tile handled by Pallas (no row pad)
    grid_k = d_hid_p // tk

    kernel = functools.partial(ffn_kernel, eps=eps, d_in_real=d_in)

    def build(single_buffer_constants):
        def spec(shape, index_map, varies):
            if single_buffer_constants and not varies:
                return pl.BlockSpec(shape, index_map, pipeline_mode=pl.Buffered(1))
            return pl.BlockSpec(shape, index_map)

        in_specs = [
            spec((tm, d_in_p), lambda i, k: (i, 0), varies=grid_m > 1),   # x row tile
            spec((d_in_p, tk), lambda i, k: (0, k), varies=grid_k > 1),   # w1 chunk
            spec((1, tk),      lambda i, k: (0, k), varies=grid_k > 1),   # b1 chunk
            spec((tk, d_in_p), lambda i, k: (k, 0), varies=grid_k > 1),   # w2 chunk
            spec((1, d_in_p),  lambda i, k: (0, 0), varies=False),        # b2
            spec((1, d_in_p),  lambda i, k: (0, 0), varies=False),        # gamma
            spec((1, d_in_p),  lambda i, k: (0, 0), varies=False),        # beta
        ]
        out_spec = pl.BlockSpec((tm, d_in_p), lambda i, k: (i, 0))

        return pl.pallas_call(
            kernel,
            out_shape=jax.ShapeDtypeStruct((m, d_in_p), x.dtype),
            grid_spec=pltpu.PrefetchScalarGridSpec(
                num_scalar_prefetch=0,
                grid=(grid_m, grid_k),
                in_specs=in_specs,
                out_specs=out_spec,
                scratch_shapes=[pltpu.VMEM((tm, d_in_p), jnp.float32)],
            ),
            compiler_params=pltpu.CompilerParams(
                dimension_semantics=("parallel", "arbitrary"),
                vmem_limit_bytes=48 * 1024 * 1024,
            ),
        )

    args = (x2d, w1p, b1p, w2p, b2p, gammap, betap)
    try:
        out = build(True)(*args)
    except Exception:
        # Installed Pallas rejects pipeline_mode=Buffered(1): fall back to default buffering.
        out = build(False)(*args)

    if d_in_p != d_in:
        out = out[:, :d_in]
    return out.reshape(orig_shape)


def reference(x, w1, b1, w2, b2, gamma, beta, eps=1e-6):
    h = jnp.maximum(x @ w1 + b1, 0.0)
    y = h @ w2 + b2 + x
    mean = jnp.mean(y, axis=-1, keepdims=True)
    var = jnp.mean((y - mean) ** 2, axis=-1, keepdims=True)
    return (y - mean) / jnp.sqrt(var + eps) * gamma + beta


if __name__ == "__main__":
    key = jax.random.PRNGKey(0)
    batch, seq, d_in, d_hid = 2, 8, 32, 64

    k_x, k_w1, k_b1, k_w2, k_b2 = jax.random.split(key, 5)

    x = jax.random.normal(k_x, (batch, seq, d_in), dtype=jnp.float32)

    # Deterministic parameter init (PyTorch-style uniform bounds, synthetic values).
    bound1 = 1.0 / (d_in ** 0.5)
    bound2 = 1.0 / (d_hid ** 0.5)
    w1 = jax.random.uniform(k_w1, (d_in, d_hid), minval=-bound1, maxval=bound1, dtype=jnp.float32)
    b1 = jax.random.uniform(k_b1, (d_hid,), minval=-bound1, maxval=bound1, dtype=jnp.float32)
    w2 = jax.random.uniform(k_w2, (d_hid, d_in), minval=-bound2, maxval=bound2, dtype=jnp.float32)
    b2 = jax.random.uniform(k_b2, (d_in,), minval=-bound2, maxval=bound2, dtype=jnp.float32)
    gamma = jnp.ones((d_in,), dtype=jnp.float32)   # nn.LayerNorm default weight
    beta = jnp.zeros((d_in,), dtype=jnp.float32)   # nn.LayerNorm default bias

    out = positionwise_feed_forward(x, w1, b1, w2, b2, gamma, beta)
    out = jax.block_until_ready(out)

    ref = reference(x, w1, b1, w2, b2, gamma, beta)
    assert out.shape == x.shape
    assert jnp.allclose(out, ref, atol=1e-4, rtol=1e-4), "mismatch vs reference"

    print("KERNEL_OK")
</pallas_src>

<mosaic_0001>
module attributes {stable_mosaic.version = 11 : i64} {
  func.func @ffn_kernel(%arg0: i32, %arg1: i32, %arg2: memref<16x128xf32, #tpu.memory_space<vmem>>, %arg3: memref<128x128xf32, #tpu.memory_space<vmem>>, %arg4: memref<1x128xf32, #tpu.memory_space<vmem>>, %arg5: memref<128x128xf32, #tpu.memory_space<vmem>>, %arg6: memref<1x128xf32, #tpu.memory_space<vmem>>, %arg7: memref<1x128xf32, #tpu.memory_space<vmem>>, %arg8: memref<1x128xf32, #tpu.memory_space<vmem>>, %arg9: memref<16x128xf32, #tpu.memory_space<vmem>>, %arg10: memref<16x128xf32, #tpu.memory_space<vmem>>) attributes {dimension_semantics = [#tpu.dimension_semantics<parallel>, #tpu.dimension_semantics<arbitrary>], iteration_bounds = array<i64: 1, 1>, scalar_prefetch = 0 : i64, scratch_operands = 1 : i64, tpu.core_type = #tpu.core_type<tc>, window_params = [{pipeline_mode = #tpu.pipeline_mode<synchronous>, transform_indices = @transform_0, window_bounds = array<i64: 16, 128>}, {pipeline_mode = #tpu.pipeline_mode<synchronous>, transform_indices = @transform_1, window_bounds = array<i64: 128, 128>}, {pipeline_mode = #tpu.pipeline_mode<synchronous>, transform_indices = @transform_2, window_bounds = array<i64: 1, 128>}, {pipeline_mode = #tpu.pipeline_mode<synchronous>, transform_indices = @transform_3, window_bounds = array<i64: 128, 128>}, {pipeline_mode = #tpu.pipeline_mode<synchronous>, transform_indices = @transform_4, window_bounds = array<i64: 1, 128>}, {pipeline_mode = #tpu.pipeline_mode<synchronous>, transform_indices = @transform_5, window_bounds = array<i64: 1, 128>}, {pipeline_mode = #tpu.pipeline_mode<synchronous>, transform_indices = @transform_6, window_bounds = array<i64: 1, 128>}, {transform_indices = @transform_7, window_bounds = array<i64: 16, 128>}]} {
    %c0_i32 = arith.constant 0 : i32
    %0 = arith.cmpi eq, %arg1, %c0_i32 : i32
    %1 = arith.extui %0 : i1 to i32
    %c0_i32_0 = arith.constant 0 : i32
    %2 = arith.cmpi ne, %1, %c0_i32_0 : i32
    scf.if %2 {
      %cst_16 = arith.constant 0.000000e+00 : f32
      %19 = vector.broadcast %cst_16 : f32 to vector<16x128xf32>
      %c0_17 = arith.constant 0 : index
      %c0_18 = arith.constant 0 : index
      %20 = vector.load %arg10[%c0_17, %c0_18] : memref<16x128xf32, #tpu.memory_space<vmem>>, vector<16x128xf32>
      tpu.vector_store %arg10[%c0_17, %c0_18], %19 {strides = array<i32>} : memref<16x128xf32, #tpu.memory_space<vmem>>, vector<16x128xf32>,
    } else {
    }
    %c0 = arith.constant 0 : index
    %c0_1 = arith.constant 0 : index
    %3 = vector.load %arg2[%c0, %c0_1] : memref<16x128xf32, #tpu.memory_space<vmem>>, vector<16x128xf32>
    %c0_2 = arith.constant 0 : index
    %c0_3 = arith.constant 0 : index
    %4 = vector.load %arg3[%c0_2, %c0_3] : memref<128x128xf32, #tpu.memory_space<vmem>>, vector<128x128xf32>
    %cst = arith.constant dense<0.000000e+00> : vector<16x128xf32>
    %5 = tpu.matmul %3, %4, %cst {dimension_numbers = #tpu.dot_dimension_numbers<[1], [0], [0], [1], [0, 0, 1, 1], [], []>} : vector<16x128xf32>, vector<128x128xf32>, vector<16x128xf32> -> vector<16x128xf32>
    %c0_4 = arith.constant 0 : index
    %c0_5 = arith.constant 0 : index
    %6 = vector.load %arg4[%c0_4, %c0_5] : memref<1x128xf32, #tpu.memory_space<vmem>>, vector<1x128xf32>
    %7 = vector.broadcast %6 : vector<1x128xf32> to vector<16x128xf32>
    %8 = arith.addf %5, %7 : vector<16x128xf32>
    %cst_6 = arith.constant 0.000000e+00 : f32
    %9 = vector.broadcast %cst_6 : f32 to vector<16x128xf32>
    %10 = arith.maximumf %8, %9 : vector<16x128xf32>
    %c0_7 = arith.constant 0 : index
    %c0_8 = arith.constant 0 : index
    %11 = vector.load %arg10[%c0_7, %c0_8] : memref<16x128xf32, #tpu.memory_space<vmem>>, vector<16x128xf32>
    %c0_9 = arith.constant 0 : index
    %c0_10 = arith.constant 0 : index
    %12 = vector.load %arg5[%c0_9, %c0_10] : memref<128x128xf32, #tpu.memory_space<vmem>>, vector<128x128xf32>
    %cst_11 = arith.constant dense<0.000000e+00> : vector<16x128xf32>
    %13 = tpu.matmul %10, %12, %cst_11 {dimension_numbers = #tpu.dot_dimension_numbers<[1], [0], [0], [1], [0, 0, 1, 1], [], []>} : vector<16x128xf32>, vector<128x128xf32>, vector<16x128xf32> -> vector<16x128xf32>
    %14 = arith.addf %11, %13 : vector<16x128xf32>
    %c0_12 = arith.constant 0 : index
    %c0_13 = arith.constant 0 : index
    %15 = vector.load %arg10[%c0_12, %c0_13] : memref<16x128xf32, #tpu.memory_space<vmem>>, vector<16x128xf32>
    tpu.vector_store %arg10[%c0_12, %c0_13], %14 {strides = array<i32>} : memref<16x128xf32, #tpu.memory_space<vmem>>, vector<16x128xf32>,
    %c0_i32_14 = arith.constant 0 : i32
    %16 = arith.cmpi eq, %arg1, %c0_i32_14 : i32
    %17 = arith.extui %16 : i1 to i32
    %c0_i32_15 = arith.constant 0 : i32
    %18 = arith.cmpi ne, %17, %c0_i32_15 : i32
    scf.if %18 {
      %c0_16 = arith.constant 0 : index
      %c0_17 = arith.constant 0 : index
      %19 = vector.load %arg10[%c0_16, %c0_17] : memref<16x128xf32, #tpu.memory_space<vmem>>, vector<16x128xf32>
      %c0_18 = arith.constant 0 : index
      %c0_19 = arith.constant 0 : index
      %20 = vector.load %arg6[%c0_18, %c0_19] : memref<1x128xf32, #tpu.memory_space<vmem>>, vector<1x128xf32>
      %21 = vector.broadcast %20 : vector<1x128xf32> to vector<16x128xf32>
      %22 = arith.addf %19, %21 : vector<16x128xf32>
      %c0_20 = arith.constant 0 : index
      %c0_21 = arith.constant 0 : index
      %23 = vector.load %arg2[%c0_20, %c0_21] : memref<16x128xf32, #tpu.memory_space<vmem>>, vector<16x128xf32>
      %24 = arith.addf %22, %23 : vector<16x128xf32>
      %25 = tpu.iota {dimensions = array<i32: 1>} : vector<16x128xi32>
      %c32_i32 = arith.constant 32 : i32
      %26 = vector.broadcast %c32_i32 : i32 to vector<16x128xi32>
      %27 = arith.cmpi slt, %25, %26 : vector<16x128xi32>
      %cst_22 = arith.constant 0.000000e+00 : f32
      %28 = vector.broadcast %cst_22 : f32 to vector<16x128xf32>
      %29 = arith.select %27, %24, %28 : vector<16x128xi1>, vector<16x128xf32>
      %cst_23 = arith.constant dense<0.000000e+00> : vector<16xf32>
      %30 = vector.multi_reduction <add>, %29, %cst_23 [1] : vector<16x128xf32> to vector<16xf32>
      %31 = vector.shape_cast %30 : vector<16xf32> to vector<16x1xf32>
      %cst_24 = arith.constant 3.125000e-02 : f32
      %32 = vector.broadcast %cst_24 : f32 to vector<16x1xf32>
      %33 = arith.mulf %31, %32 : vector<16x1xf32>
      %34 = vector.broadcast %33 : vector<16x1xf32> to vector<16x128xf32>
      %35 = arith.subf %29, %34 : vector<16x128xf32>
      %cst_25 = arith.constant 0.000000e+00 : f32
      %36 = vector.broadcast %cst_25 : f32 to vector<16x128xf32>
      %37 = arith.select %27, %35, %36 : vector<16x128xi1>, vector<16x128xf32>
      %38 = arith.mulf %37, %37 : vector<16x128xf32>
      %cst_26 = arith.constant dense<0.000000e+00> : vector<16xf32>
      %39 = vector.multi_reduction <add>, %38, %cst_26 [1] : vector<16x128xf32> to vector<16xf32>
      %40 = vector.shape_cast %39 : vector<16xf32> to vector<16x1xf32>
      %cst_27 = arith.constant 3.125000e-02 : f32
      %41 = vector.broadcast %cst_27 : f32 to vector<16x1xf32>
      %42 = arith.mulf %40, %41 : vector<16x1xf32>
      %cst_28 = arith.constant 9.99999997E-7 : f32
      %43 = vector.broadcast %cst_28 : f32 to vector<16x1xf32>
      %44 = arith.addf %42, %43 : vector<16x1xf32>
      %45 = math.rsqrt %44 : vector<16x1xf32>
      %46 = vector.broadcast %45 : vector<16x1xf32> to vector<16x128xf32>
      %47 = arith.mulf %37, %46 : vector<16x128xf32>
      %c0_29 = arith.constant 0 : index
      %c0_30 = arith.constant 0 : index
      %48 = vector.load %arg7[%c0_29, %c0_30] : memref<1x128xf32, #tpu.memory_space<vmem>>, vector<1x128xf32>
      %49 = vector.broadcast %48 : vector<1x128xf32> to vector<16x128xf32>
      %50 = arith.mulf %47, %49 : vector<16x128xf32>
      %c0_31 = arith.constant 0 : index
      %c0_32 = arith.constant 0 : index
      %51 = vector.load %arg8[%c0_31, %c0_32] : memref<1x128xf32, #tpu.memory_space<vmem>>, vector<1x128xf32>
      %52 = vector.broadcast %51 : vector<1x128xf32> to vector<16x128xf32>
      %53 = arith.addf %50, %52 : vector<16x128xf32>
      %c0_33 = arith.constant 0 : index
      %c0_34 = arith.constant 0 : index
      %54 = vector.load %arg9[%c0_33, %c0_34] : memref<16x128xf32, #tpu.memory_space<vmem>>, vector<16x128xf32>
      tpu.vector_store %arg9[%c0_33, %c0_34], %53 {strides = array<i32>} : memref<16x128xf32, #tpu.memory_space<vmem>>, vector<16x128xf32>,
    } else {
    }
    return
  }
  func.func @transform_0(%arg0: i32, %arg1: i32) -> (i32, i32) {
    %c0_i32 = arith.constant 0 : i32
    %c0_i32_0 = arith.constant 0 : i32
    return %arg0, %c0_i32 : i32, i32
  }
  func.func @transform_1(%arg0: i32, %arg1: i32) -> (i32, i32) {
    %c0_i32 = arith.constant 0 : i32
    %c0_i32_0 = arith.constant 0 : i32
    return %c0_i32, %arg1 : i32, i32
  }
  func.func @transform_2(%arg0: i32, %arg1: i32) -> (i32, i32) {
    %c0_i32 = arith.constant 0 : i32
    %c0_i32_0 = arith.constant 0 : i32
    return %c0_i32, %arg1 : i32, i32
  }
  func.func @transform_3(%arg0: i32, %arg1: i32) -> (i32, i32) {
    %c0_i32 = arith.constant 0 : i32
    %c0_i32_0 = arith.constant 0 : i32
    return %arg1, %c0_i32 : i32, i32
  }
  func.func @transform_4(%arg0: i32, %arg1: i32) -> (i32, i32) {
    %c0_i32 = arith.constant 0 : i32
    %c0_i32_0 = arith.constant 0 : i32
    %c0_i32_1 = arith.constant 0 : i32
    return %c0_i32, %c0_i32_0 : i32, i32
  }
  func.func @transform_5(%arg0: i32, %arg1: i32) -> (i32, i32) {
    %c0_i32 = arith.constant 0 : i32
    %c0_i32_0 = arith.constant 0 : i32
    %c0_i32_1 = arith.constant 0 : i32
    return %c0_i32, %c0_i32_0 : i32, i32
  }
  func.func @transform_6(%arg0: i32, %arg1: i32) -> (i32, i32) {
    %c0_i32 = arith.constant 0 : i32
    %c0_i32_0 = arith.constant 0 : i32
    %c0_i32_1 = arith.constant 0 : i32
    return %c0_i32, %c0_i32_0 : i32, i32
  }
  func.func @transform_7(%arg0: i32, %arg1: i32) -> (i32, i32) {
    %c0_i32 = arith.constant 0 : i32
    %c0_i32_0 = arith.constant 0 : i32
    return %arg0, %c0_i32 : i32, i32
  }
}

module attributes {stable_mosaic.version = 11 : i64} {
  func.func @ffn_kernel(%arg0: i32, %arg1: i32, %arg2: memref<16x128xf32, #tpu.memory_space<vmem>>, %arg3: memref<128x128xf32, #tpu.memory_space<vmem>>, %arg4: memref<1x128xf32, #tpu.memory_space<vmem>>, %arg5: memref<128x128xf32, #tpu.memory_space<vmem>>, %arg6: memref<1x128xf32, #tpu.memory_space<vmem>>, %arg7: memref<1x128xf32, #tpu.memory_space<vmem>>, %arg8: memref<1x128xf32, #tpu.memory_space<vmem>>, %arg9: memref<16x128xf32, #tpu.memory_space<vmem>>, %arg10: memref<16x128xf32, #tpu.memory_space<vmem>>) attributes {dimension_semantics = [#tpu.dimension_semantics<parallel>, #tpu.dimension_semantics<arbitrary>], iteration_bounds = array<i64: 1, 1>, scalar_prefetch = 0 : i64, scratch_operands = 1 : i64, tpu.core_type = #tpu.core_type<tc>, window_params = [{transform_indices = @transform_0, window_bounds = array<i64: 16, 128>}, {transform_indices = @transform_1, window_bounds = array<i64: 128, 128>}, {transform_indices = @transform_2, window_bounds = array<i64: 1, 128>}, {transform_indices = @transform_3, window_bounds = array<i64: 128, 128>}, {pipeline_mode = #tpu.pipeline_mode<synchronous>, transform_indices = @transform_4, window_bounds = array<i64: 1, 128>}, {pipeline_mode = #tpu.pipeline_mode<synchronous>, transform_indices = @transform_5, window_bounds = array<i64: 1, 128>}, {pipeline_mode = #tpu.pipeline_mode<synchronous>, transform_indices = @transform_6, window_bounds = array<i64: 1, 128>}, {transform_indices = @transform_7, window_bounds = array<i64: 16, 128>}]} {
    %c0_i32 = arith.constant 0 : i32
    %0 = arith.cmpi eq, %arg1, %c0_i32 : i32
    %1 = arith.extui %0 : i1 to i32
    %c0_i32_0 = arith.constant 0 : i32
    %2 = arith.cmpi ne, %1, %c0_i32_0 : i32
    scf.if %2 {
      %cst_16 = arith.constant 0.000000e+00 : f32
      %19 = vector.broadcast %cst_16 : f32 to vector<16x128xf32>
      %c0_17 = arith.constant 0 : index
      %c0_18 = arith.constant 0 : index
      %20 = vector.load %arg10[%c0_17, %c0_18] : memref<16x128xf32, #tpu.memory_space<vmem>>, vector<16x128xf32>
      tpu.vector_store %arg10[%c0_17, %c0_18], %19 {strides = array<i32>} : memref<16x128xf32, #tpu.memory_space<vmem>>, vector<16x128xf32>,
    } else {
    }
    %c0 = arith.constant 0 : index
    %c0_1 = arith.constant 0 : index
    %3 = vector.load %arg2[%c0, %c0_1] : memref<16x128xf32, #tpu.memory_space<vmem>>, vector<16x128xf32>
    %c0_2 = arith.constant 0 : index
    %c0_3 = arith.constant 0 : index
    %4 = vector.load %arg3[%c0_2, %c0_3] : memref<128x128xf32, #tpu.memory_space<vmem>>, vector<128x128xf32>
    %cst = arith.constant dense<0.000000e+00> : vector<16x128xf32>
    %5 = tpu.matmul %3, %4, %cst {dimension_numbers = #tpu.dot_dimension_numbers<[1], [0], [0], [1], [0, 0, 1, 1], [], []>} : vector<16x128xf32>, vector<128x128xf32>, vector<16x128xf32> -> vector<16x128xf32>
    %c0_4 = arith.constant 0 : index
    %c0_5 = arith.constant 0 : index
    %6 = vector.load %arg4[%c0_4, %c0_5] : memref<1x128xf32, #tpu.memory_space<vmem>>, vector<1x128xf32>
    %7 = vector.broadcast %6 : vector<1x128xf32> to vector<16x128xf32>
    %8 = arith.addf %5, %7 : vector<16x128xf32>
    %cst_6 = arith.constant 0.000000e+00 : f32
    %9 = vector.broadcast %cst_6 : f32 to vector<16x128xf32>
    %10 = arith.maximumf %8, %9 : vector<16x128xf32>
    %c0_7 = arith.constant 0 : index
    %c0_8 = arith.constant 0 : index
    %11 = vector.load %arg10[%c0_7, %c0_8] : memref<16x128xf32, #tpu.memory_space<vmem>>, vector<16x128xf32>
    %c0_9 = arith.constant 0 : index
    %c0_10 = arith.constant 0 : index
    %12 = vector.load %arg5[%c0_9, %c0_10] : memref<128x128xf32, #tpu.memory_space<vmem>>, vector<128x128xf32>
    %cst_11 = arith.constant dense<0.000000e+00> : vector<16x128xf32>
    %13 = tpu.matmul %10, %12, %cst_11 {dimension_numbers = #tpu.dot_dimension_numbers<[1], [0], [0], [1], [0, 0, 1, 1], [], []>} : vector<16x128xf32>, vector<128x128xf32>, vector<16x128xf32> -> vector<16x128xf32>
    %14 = arith.addf %11, %13 : vector<16x128xf32>
    %c0_12 = arith.constant 0 : index
    %c0_13 = arith.constant 0 : index
    %15 = vector.load %arg10[%c0_12, %c0_13] : memref<16x128xf32, #tpu.memory_space<vmem>>, vector<16x128xf32>
    tpu.vector_store %arg10[%c0_12, %c0_13], %14 {strides = array<i32>} : memref<16x128xf32, #tpu.memory_space<vmem>>, vector<16x128xf32>,
    %c0_i32_14 = arith.constant 0 : i32
    %16 = arith.cmpi eq, %arg1, %c0_i32_14 : i32
    %17 = arith.extui %16 : i1 to i32
    %c0_i32_15 = arith.constant 0 : i32
    %18 = arith.cmpi ne, %17, %c0_i32_15 : i32
    scf.if %18 {
      %c0_16 = arith.constant 0 : index
      %c0_17 = arith.constant 0 : index
      %19 = vector.load %arg10[%c0_16, %c0_17] : memref<16x128xf32, #tpu.memory_space<vmem>>, vector<16x128xf32>
      %c0_18 = arith.constant 0 : index
      %c0_19 = arith.constant 0 : index
      %20 = vector.load %arg6[%c0_18, %c0_19] : memref<1x128xf32, #tpu.memory_space<vmem>>, vector<1x128xf32>
      %21 = vector.broadcast %20 : vector<1x128xf32> to vector<16x128xf32>
      %22 = arith.addf %19, %21 : vector<16x128xf32>
      %c0_20 = arith.constant 0 : index
      %c0_21 = arith.constant 0 : index
      %23 = vector.load %arg2[%c0_20, %c0_21] : memref<16x128xf32, #tpu.memory_space<vmem>>, vector<16x128xf32>
      %24 = arith.addf %22, %23 : vector<16x128xf32>
      %25 = tpu.iota {dimensions = array<i32: 1>} : vector<16x128xi32>
      %c32_i32 = arith.constant 32 : i32
      %26 = vector.broadcast %c32_i32 : i32 to vector<16x128xi32>
      %27 = arith.cmpi slt, %25, %26 : vector<16x128xi32>
      %cst_22 = arith.constant 0.000000e+00 : f32
      %28 = vector.broadcast %cst_22 : f32 to vector<16x128xf32>
      %29 = arith.select %27, %24, %28 : vector<16x128xi1>, vector<16x128xf32>
      %cst_23 = arith.constant dense<0.000000e+00> : vector<16xf32>
      %30 = vector.multi_reduction <add>, %29, %cst_23 [1] : vector<16x128xf32> to vector<16xf32>
      %31 = vector.shape_cast %30 : vector<16xf32> to vector<16x1xf32>
      %cst_24 = arith.constant 3.125000e-02 : f32
      %32 = vector.broadcast %cst_24 : f32 to vector<16x1xf32>
      %33 = arith.mulf %31, %32 : vector<16x1xf32>
      %34 = vector.broadcast %33 : vector<16x1xf32> to vector<16x128xf32>
      %35 = arith.subf %29, %34 : vector<16x128xf32>
      %cst_25 = arith.constant 0.000000e+00 : f32
      %36 = vector.broadcast %cst_25 : f32 to vector<16x128xf32>
      %37 = arith.select %27, %35, %36 : vector<16x128xi1>, vector<16x128xf32>
      %38 = arith.mulf %37, %37 : vector<16x128xf32>
      %cst_26 = arith.constant dense<0.000000e+00> : vector<16xf32>
      %39 = vector.multi_reduction <add>, %38, %cst_26 [1] : vector<16x128xf32> to vector<16xf32>
      %40 = vector.shape_cast %39 : vector<16xf32> to vector<16x1xf32>
      %cst_27 = arith.constant 3.125000e-02 : f32
      %41 = vector.broadcast %cst_27 : f32 to vector<16x1xf32>
      %42 = arith.mulf %40, %41 : vector<16x1xf32>
      %cst_28 = arith.constant 9.99999997E-7 : f32
      %43 = vector.broadcast %cst_28 : f32 to vector<16x1xf32>
      %44 = arith.addf %42, %43 : vector<16x1xf32>
      %45 = math.rsqrt %44 : vector<16x1xf32>
      %46 = vector.broadcast %45 : vector<16x1xf32> to vector<16x128xf32>
      %47 = arith.mulf %37, %46 : vector<16x128xf32>
      %c0_29 = arith.constant 0 : index
      %c0_30 = arith.constant 0 : index
      %48 = vector.load %arg7[%c0_29, %c0_30] : memref<1x128xf32, #tpu.memory_space<vmem>>, vector<1x128xf32>
      %49 = vector.broadcast %48 : vector<1x128xf32> to vector<16x128xf32>
      %50 = arith.mulf %47, %49 : vector<16x128xf32>
      %c0_31 = arith.constant 0 : index
      %c0_32 = arith.constant 0 : index
      %51 = vector.load %arg8[%c0_31, %c0_32] : memref<1x128xf32, #tpu.memory_space<vmem>>, vector<1x128xf32>
      %52 = vector.broadcast %51 : vector<1x128xf32> to vector<16x128xf32>
      %53 = arith.addf %50, %52 : vector<16x128xf32>
      %c0_33 = arith.constant 0 : index
      %c0_34 = arith.constant 0 : index
      %54 = vector.load %arg9[%c0_33, %c0_34] : memref<16x128xf32, #tpu.memory_space<vmem>>, vector<16x128xf32>
      tpu.vector_store %arg9[%c0_33, %c0_34], %53 {strides = array<i32>} : memref<16x128xf32, #tpu.memory_space<vmem>>, vector<16x128xf32>,
    } else {
    }
    return
  }
  func.func @transform_0(%arg0: i32, %arg1: i32) -> (i32, i32) {
    %c0_i32 = arith.constant 0 : i32
    %c0_i32_0 = arith.constant 0 : i32
    return %arg0, %c0_i32 : i32, i32
  }
  func.func @transform_1(%arg0: i32, %arg1: i32) -> (i32, i32) {
    %c0_i32 = arith.constant 0 : i32
    %c0_i32_0 = arith.constant 0 : i32
    return %c0_i32, %arg1 : i32, i32
  }
  func.func @transform_2(%arg0: i32, %arg1: i32) -> (i32, i32) {
    %c0_i32 = arith.constant 0 : i32
    %c0_i32_0 = arith.constant 0 : i32
    return %c0_i32, %arg1 : i32, i32
  }
  func.func @transform_3(%arg0: i32, %arg1: i32) -> (i32, i32) {
    %c0_i32 = arith.constant 0 : i32
    %c0_i32_0 = arith.constant 0 : i32
    return %arg1, %c0_i32 : i32, i32
  }
  func.func @transform_4(%arg0: i32, %arg1: i32) -> (i32, i32) {
    %c0_i32 = arith.constant 0 : i32
    %c0_i32_0 = arith.constant 0 : i32
    %c0_i32_1 = arith.constant 0 : i32
    return %c0_i32, %c0_i32_0 : i32, i32
  }
  func.func @transform_5(%arg0: i32, %arg1: i32) -> (i32, i32) {
    %c0_i32 = arith.constant 0 : i32
    %c0_i32_0 = arith.constant 0 : i32
    %c0_i32_1 = arith.constant 0 : i32
    return %c0_i32, %c0_i32_0 : i32, i32
  }
  func.func @transform_6(%arg0: i32, %arg1: i32) -> (i32, i32) {
    %c0_i32 = arith.constant 0 : i32
    %c0_i32_0 = arith.constant 0 : i32
    %c0_i32_1 = arith.constant 0 : i32
    return %c0_i32, %c0_i32_0 : i32, i32
  }
  func.func @transform_7(%arg0: i32, %arg1: i32) -> (i32, i32) {
    %c0_i32 = arith.constant 0 : i32
    %c0_i32_0 = arith.constant 0 : i32
    return %arg0, %c0_i32 : i32, i32
  }
}

</mosaic_0001>

<llo_original>
// kernel: tpu_custom_call.1
$region0: #{tpu_custom_call.1}
  #allocation0 [shape = 'u32[]', space=smem, size = 0x4, offset = 0x4, fixed_abs, tag = 'smem constant byte address 0x4 - core index']
  #allocation1 [shape = 'u32[144,128]{1,0:T(1,128)}', space=vmem, size = 0x12000, scoped, tag = 'internal scratch']
  #allocation2 [shape = 'f32[16,128]{1,0:T(8,128)}', space=vmem, size = 0x2000, scoped, tag = 'scratch operand']
  %s0 = inlined_call_operand.hbm [shape: f32[16,128], index: 0, kind: input, shape index: {}]
  %s1 = inlined_call_operand.hbm [shape: f32[128,128], index: 1, kind: input, shape index: {}]
  %s2 = inlined_call_operand.vmem [shape: f32[1,128], index: 2, kind: input, shape index: {}]
  %s3 = inlined_call_operand.hbm [shape: f32[128,128], index: 3, kind: input, shape index: {}]
  %s4 = inlined_call_operand.vmem [shape: f32[1,128], index: 4, kind: input, shape index: {}]
  %s5 = inlined_call_operand.vmem [shape: f32[1,128], index: 5, kind: input, shape index: {}]
  %s6 = inlined_call_operand.vmem [shape: f32[1,128], index: 6, kind: input, shape index: {}]
  %s7 = inlined_call_operand.hbm [shape: f32[16,128], index: 7, kind: output, shape index: {}]
  %s8 = sld [smem:[#allocation0]]
  $region58: #{tpu_custom_call.1} parent=0
    _
  %s10 = ssub.s32 1, %s8
  %s11 = scalar_select 0, %s10, %s8
  $region1: #{tpu_custom_call.1} parent=0
    #allocation3 [shape = 'u8[8192]{0}', space=vmem, size = 0x2000, scoped, tag = 'input window, operand 0, single buffered']
    #allocation4 [shape = 's32[1]{0}', space=sflag, size = 0x4, scoped, tag = 'scoped memory for tpu_custom_call.1']
    #allocation5 [shape = 's32[1]{0}', space=sflag, size = 0x4, scoped, tag = 'scoped memory for tpu_custom_call.1']
    #allocation6 [shape = 'u8[65536]{0}', space=vmem, size = 0x10000, scoped, tag = 'input window, operand 1, single buffered']
    #allocation7 [shape = 's32[1]{0}', space=sflag, size = 0x4, scoped, tag = 'scoped memory for tpu_custom_call.1']
    #allocation8 [shape = 'u8[65536]{0}', space=vmem, size = 0x10000, scoped, tag = 'input window, operand 3, single buffered']
    #allocation9 [shape = 'u8[8192]{0}', space=vmem, size = 0x2000, scoped, tag = 'output window, operand 0, single buffered']
    %12 = vsyncpa [#allocation4], 0
    %13 = vsyncpa [#allocation7], 0
    %14 = vsyncpa [#allocation5], 0
    // Predicated region
    $region2: #{tpu_custom_call.1} parent=1 // pred_check
      _
    $region3: #{tpu_custom_call.1} parent=1 // pred_check_branch
      %16 = sbr.rel (0) target = $region5
    $region4: #{tpu_custom_call.1} parent=1 // pred_region
      %s18 = ssub.s32 256, 256
      %19 = vsyncadd [#allocation4], %s18
      %s20 = sshll.u32 [#allocation3], 4
      %s21 = int_to_ptr.vmem [resolvable:$true] %s20
      %26 = dma.hbm_to_vmem [thread:$0]  %s0, 256, %s21, [#allocation4], 128, 128, 8
    $region5: #{tpu_custom_call.1} parent=1 // pred_fallthru
      _
    // Predicated region
    $region6: #{tpu_custom_call.1} parent=1 // pred_check
      _
    $region7: #{tpu_custom_call.1} parent=1 // pred_check_branch
      %28 = sbr.rel (0) target = $region9
    $region8: #{tpu_custom_call.1} parent=1 // pred_region
      %s30 = ssub.s32 2048, 2048
      %31 = vsyncadd [#allocation7], %s30
      %s32 = sshll.u32 [#allocation6], 4
      %s33 = int_to_ptr.vmem [resolvable:$true] %s32
      %38 = dma.hbm_to_vmem [thread:$0]  %s1, 2048, %s33, [#allocation7], 128, 128, 8
    $region9: #{tpu_custom_call.1} parent=1 // pred_fallthru
      _
    // Predicated region
    $region10: #{tpu_custom_call.1} parent=1 // pred_check
      _
    $region11: #{tpu_custom_call.1} parent=1 // pred_check_branch
      %40 = sbr.rel (0) target = $region13
    $region12: #{tpu_custom_call.1} parent=1 // pred_region
      _
    $region13: #{tpu_custom_call.1} parent=1 // pred_fallthru
      _
    // Predicated region
    $region14: #{tpu_custom_call.1} parent=1 // pred_check
      _
    $region15: #{tpu_custom_call.1} parent=1 // pred_check_branch
      %42 = sbr.rel (0) target = $region17
    $region16: #{tpu_custom_call.1} parent=1 // pred_region
      %s44 = ssub.s32 2048, 2048
      %45 = vsyncadd [#allocation7], %s44
      %s46 = sshll.u32 [#allocation8], 4
      %s47 = int_to_ptr.vmem [resolvable:$true] %s46
      %52 = dma.hbm_to_vmem [thread:$0]  %s3, 2048, %s47, [#allocation7], 128, 128, 8
    $region17: #{tpu_custom_call.1} parent=1 // pred_fallthru
      _
    // Predicated region
    $region18: #{tpu_custom_call.1} parent=1 // pred_check
      _
    $region19: #{tpu_custom_call.1} parent=1 // pred_check_branch
      %54 = sbr.rel (0) target = $region21
    $region20: #{tpu_custom_call.1} parent=1 // pred_region
      _
    $region21: #{tpu_custom_call.1} parent=1 // pred_fallthru
      _
    // Predicated region
    $region22: #{tpu_custom_call.1} parent=1 // pred_check
      _
    $region23: #{tpu_custom_call.1} parent=1 // pred_check_branch
      %56 = sbr.rel (0) target = $region25
    $region24: #{tpu_custom_call.1} parent=1 // pred_region
      _
    $region25: #{tpu_custom_call.1} parent=1 // pred_fallthru
      _
    // Predicated region
    $region26: #{tpu_custom_call.1} parent=1 // pred_check
      _
    $region27: #{tpu_custom_call.1} parent=1 // pred_check_branch
      %58 = sbr.rel (0) target = $region29
    $region28: #{tpu_custom_call.1} parent=1 // pred_region
      _
    $region29: #{tpu_custom_call.1} parent=1 // pred_fallthru
      _
    // Predicated region
    $region30: #{tpu_custom_call.1} parent=1 // pred_check
      _
    $region31: #{tpu_custom_call.1} parent=1 // pred_check_branch
      %60 = sbr.rel (0) target = $region33
    $region32: #{tpu_custom_call.1} parent=1 // pred_region
      %61 = dma.done [#allocation4], 256
    $region33: #{tpu_custom_call.1} parent=1 // pred_fallthru
      _
    // Predicated region
    $region34: #{tpu_custom_call.1} parent=1 // pred_check
      _
    $region35: #{tpu_custom_call.1} parent=1 // pred_check_branch
      %63 = sbr.rel (0) target = $region37
    $region36: #{tpu_custom_call.1} parent=1 // pred_region
      %64 = dma.done [#allocation7], 2048
    $region37: #{tpu_custom_call.1} parent=1 // pred_fallthru
      _
    // Predicated region
    $region38: #{tpu_custom_call.1} parent=1 // pred_check
      _
    $region39: #{tpu_custom_call.1} parent=1 // pred_check_branch
      %66 = sbr.rel (0) target = $region41
    $region40: #{tpu_custom_call.1} parent=1 // pred_region
      %67 = dma.done [#allocation7], 2048
    $region41: #{tpu_custom_call.1} parent=1 // pred_fallthru
      _
    %p68 = scmp.eq.s32.totalorder 0, 0
    // Predicated region
    $region42: #{tpu_custom_call.1} parent=1 // pred_check
      %p69 = pneg %p68
    $region43: #{tpu_custom_call.1} parent=1 // pred_check_branch
      %71 = sbr.rel (%p69) target = $region45
    $region44: #{tpu_custom_call.1} parent=1 // pred_region
      %72 = vst [vmem:[#allocation2] sm:$0xff] 0.0
      %73 = vst [vmem:[#allocation2 + $0x8] sm:$0xff] 0.0
    $region45: #{tpu_custom_call.1} parent=1 // pred_fallthru
      _
    %v74 = vld [vmem:[#allocation3] sm:$0xff]
    %v75 = vld [vmem:[#allocation3 + $0x8] sm:$0xff]
    %v76 = vld [vmem:[#allocation6] sm:$0xff]
    %v77 = vld [vmem:[#allocation6 + $0x8] sm:$0xff]
    %v78 = vld [vmem:[#allocation6 + $0x10] sm:$0xff]
    %v79 = vld [vmem:[#allocation6 + $0x18] sm:$0xff]
    %v80 = vld [vmem:[#allocation6 + $0x20] sm:$0xff]
    %v81 = vld [vmem:[#allocation6 + $0x28] sm:$0xff]
    %v82 = vld [vmem:[#allocation6 + $0x30] sm:$0xff]
    %v83 = vld [vmem:[#allocation6 + $0x38] sm:$0xff]
    %v84 = vld [vmem:[#allocation6 + $0x40] sm:$0xff]
    %v85 = vld [vmem:[#allocation6 + $0x48] sm:$0xff]
    %v86 = vld [vmem:[#allocation6 + $0x50] sm:$0xff]
    %v87 = vld [vmem:[#allocation6 + $0x58] sm:$0xff]
    %v88 = vld [vmem:[#allocation6 + $0x60] sm:$0xff]
    %v89 = vld [vmem:[#allocation6 + $0x68] sm:$0xff]
    %v90 = vld [vmem:[#allocation6 + $0x70] sm:$0xff]
    %v91 = vld [vmem:[#allocation6 + $0x78] sm:$0xff]
    %v92 = vld [vmem:[%s2] sm:$0x1]
    %v94 = vlaneseq
    %v95 = vshrl.u32 %v94, 7
    %v96 = vsub.s32 0, %v95
    %v97 = vrot.slane %v92, %v96
    %99 = vmatprep.subr.mxu0 0.0
    %100 = vmatpush1.msra.mxu0 %v91
    %101 = vmatprep.subr.mxu0 0.0
    %102 = vmatpush1.msra.mxu0 %v90
    %103 = vmatprep.subr.mxu0 0.0
    %104 = vmatpush1.msra.mxu0 %v89
    %105 = vmatprep.subr.mxu0 0.0
    %106 = vmatpush1.msra.mxu0 %v88
    %107 = vmatprep.subr.mxu0 0.0
    %108 = vmatpush1.msra.mxu0 %v87
    %109 = vmatprep.subr.mxu0 0.0
    %110 = vmatpush1.msra.mxu0 %v86
    %111 = vmatprep.subr.mxu0 0.0
    %112 = vmatpush1.msra.mxu0 %v85
    %113 = vmatprep.subr.mxu0 0.0
    %114 = vmatpush1.msra.mxu0 %v84
    %115 = vmatprep.subr.mxu0 0.0
    %116 = vmatpush1.msra.mxu0 %v83
    %117 = vmatprep.subr.mxu0 0.0
    %118 = vmatpush1.msra.mxu0 %v82
    %119 = vmatprep.subr.mxu0 0.0
    %120 = vmatpush1.msra.mxu0 %v81
    %121 = vmatprep.subr.mxu0 0.0
    %122 = vmatpush1.msra.mxu0 %v80
    %123 = vmatprep.subr.mxu0 0.0
    %124 = vmatpush1.msra.mxu0 %v79
    %125 = vmatprep.subr.mxu0 0.0
    %126 = vmatpush1.msra.mxu0 %v78
    %127 = vmatprep.subr.mxu0 0.0
    %128 = vmatpush1.msra.mxu0 %v77
    %129 = vmatprep.subr.mxu0 0.0
    %130 = vmatpush1.msra.mxu0 %v76
    %131 = vmatprep.subr.mxu0 0.0
    %132 = vmatpush2.msra.mxu0 0.0
    %133 = vmatprep.subr.mxu0 0.0
    %134 = vmatpush2.msra.mxu0 0.0
    %135 = vmatprep.subr.mxu0 0.0
    %136 = vmatpush2.msra.mxu0 0.0
    %137 = vmatprep.subr.mxu0 0.0
    %138 = vmatpush2.msra.mxu0 0.0
    %139 = vmatprep.subr.mxu0 0.0
    %140 = vmatpush2.msra.mxu0 0.0
    %141 = vmatprep.subr.mxu0 0.0
    %142 = vmatpush2.msra.mxu0 0.0
    %143 = vmatprep.subr.mxu0 0.0
    %144 = vmatpush2.msra.mxu0 0.0
    %145 = vmatprep.subr.mxu0 0.0
    %146 = vmatpush2.msra.mxu0 0.0
    %147 = vmatprep.subr.mxu0 0.0
    %148 = vmatpush2.msra.mxu0 0.0
    %149 = vmatprep.subr.mxu0 0.0
    %150 = vmatpush2.msra.mxu0 0.0
    %151 = vmatprep.subr.mxu0 0.0
    %152 = vmatpush2.msra.mxu0 0.0
    %153 = vmatprep.subr.mxu0 0.0
    %154 = vmatpush2.msra.mxu0 0.0
    %155 = vmatprep.subr.mxu0 0.0
    %156 = vmatpush2.msra.mxu0 0.0
    %157 = vmatprep.subr.mxu0 0.0
    %158 = vmatpush2.msra.mxu0 0.0
    %159 = vmatprep.subr.mxu0 0.0
    %160 = vmatpush2.msra.mxu0 0.0
    %161 = vmatprep.subr.mxu0 0.0
    %162 = vmatpush2.msra.mxu0 0.0
    %163 = vmatprep.mubr.f32.mxu0 0.0
    %164 = vmatmul.mubr.f32.gmra.mxu0 %v74
    %v165 = vpop.f32.mrf.mxu0
    %v166 = vadd.f32 %v97, %v165
    %v167 = vpop.f32.mrf.mxu0
    %168 = vmatprep.mubr.f32.mxu0 0.0
    %169 = vmatmul.mubr.f32.gmra.mxu0 %v75
    %v170 = vpop.f32.mrf.mxu0
    %v171 = vadd.f32 %v97, %v170
    %v172 = vpop.f32.mrf.mxu0
    %173 = vdwg.mxu0
    %v174 = vmax.f32 %v166, 0.0
    %v175 = vmax.f32 %v171, 0.0
    %v176 = vld [vmem:[#allocation2] sm:$0xff]
    %v177 = vld [vmem:[#allocation2 + $0x8] sm:$0xff]
    %v178 = vld [vmem:[#allocation8] sm:$0xff]
    %v179 = vld [vmem:[#allocation8 + $0x8] sm:$0xff]
    %v180 = vld [vmem:[#allocation8 + $0x10] sm:$0xff]
    %v181 = vld [vmem:[#allocation8 + $0x18] sm:$0xff]
    %v182 = vld [vmem:[#allocation8 + $0x20] sm:$0xff]
    %v183 = vld [vmem:[#allocation8 + $0x28] sm:$0xff]
    %v184 = vld [vmem:[#allocation8 + $0x30] sm:$0xff]
    %v185 = vld [vmem:[#allocation8 + $0x38] sm:$0xff]
    %v186 = vld [vmem:[#allocation8 + $0x40] sm:$0xff]
    %v187 = vld [vmem:[#allocation8 + $0x48] sm:$0xff]
    %v188 = vld [vmem:[#allocation8 + $0x50] sm:$0xff]
    %v189 = vld [vmem:[#allocation8 + $0x58] sm:$0xff]
    %v190 = vld [vmem:[#allocation8 + $0x60] sm:$0xff]
    %v191 = vld [vmem:[#allocation8 + $0x68] sm:$0xff]
    %v192 = vld [vmem:[#allocation8 + $0x70] sm:$0xff]
    %v193 = vld [vmem:[#allocation8 + $0x78] sm:$0xff]
    %194 = vmatprep.subr.mxu0 0.0
    %195 = vmatpush1.msra.mxu0 %v193
    %196 = vmatprep.subr.mxu0 0.0
    %197 = vmatpush1.msra.mxu0 %v192
    %198 = vmatprep.subr.mxu0 0.0
    %199 = vmatpush1.msra.mxu0 %v191
    %200 = vmatprep.subr.mxu0 0.0
    %201 = vmatpush1.msra.mxu0 %v190
    %202 = vmatprep.subr.mxu0 0.0
    %203 = vmatpush1.msra.mxu0 %v189
    %204 = vmatprep.subr.mxu0 0.0
    %205 = vmatpush1.msra.mxu0 %v188
    %206 = vmatprep.subr.mxu0 0.0
    %207 = vmatpush1.msra.mxu0 %v187
    %208 = vmatprep.subr.mxu0 0.0
    %209 = vmatpush1.msra.mxu0 %v186
    %210 = vmatprep.subr.mxu0 0.0
    %211 = vmatpush1.msra.mxu0 %v185
    %212 = vmatprep.subr.mxu0 0.0
    %213 = vmatpush1.msra.mxu0 %v184
    %214 = vmatprep.subr.mxu0 0.0
    %215 = vmatpush1.msra.mxu0 %v183
    %216 = vmatprep.subr.mxu0 0.0
    %217 = vmatpush1.msra.mxu0 %v182
    %218 = vmatprep.subr.mxu0 0.0
    %219 = vmatpush1.msra.mxu0 %v181
    %220 = vmatprep.subr.mxu0 0.0
    %221 = vmatpush1.msra.mxu0 %v180
    %222 = vmatprep.subr.mxu0 0.0
    %223 = vmatpush1.msra.mxu0 %v179
    %224 = vmatprep.subr.mxu0 0.0
    %225 = vmatpush1.msra.mxu0 %v178
    %226 = vmatprep.subr.mxu0 0.0
    %227 = vmatpush2.msra.mxu0 0.0
    %228 = vmatprep.subr.mxu0 0.0
    %229 = vmatpush2.msra.mxu0 0.0
    %230 = vmatprep.subr.mxu0 0.0
    %231 = vmatpush2.msra.mxu0 0.0
    %232 = vmatprep.subr.mxu0 0.0
    %233 = vmatpush2.msra.mxu0 0.0
    %234 = vmatprep.subr.mxu0 0.0
    %235 = vmatpush2.msra.mxu0 0.0
    %236 = vmatprep.subr.mxu0 0.0
    %237 = vmatpush2.msra.mxu0 0.0
    %238 = vmatprep.subr.mxu0 0.0
    %239 = vmatpush2.msra.mxu0 0.0
    %240 = vmatprep.subr.mxu0 0.0
    %241 = vmatpush2.msra.mxu0 0.0
    %242 = vmatprep.subr.mxu0 0.0
    %243 = vmatpush2.msra.mxu0 0.0
    %244 = vmatprep.subr.mxu0 0.0
    %245 = vmatpush2.msra.mxu0 0.0
    %246 = vmatprep.subr.mxu0 0.0
    %247 = vmatpush2.msra.mxu0 0.0
    %248 = vmatprep.subr.mxu0 0.0
    %249 = vmatpush2.msra.mxu0 0.0
    %250 = vmatprep.subr.mxu0 0.0
    %251 = vmatpush2.msra.mxu0 0.0
    %252 = vmatprep.subr.mxu0 0.0
    %253 = vmatpush2.msra.mxu0 0.0
    %254 = vmatprep.subr.mxu0 0.0
    %255 = vmatpush2.msra.mxu0 0.0
    %256 = vmatprep.subr.mxu0 0.0
    %257 = vmatpush2.msra.mxu0 0.0
    %258 = vmatprep.mubr.f32.mxu0 0.0
    %259 = vmatmul.mubr.f32.gmra.mxu0 %v174
    %v260 = vpop.f32.mrf.mxu0
    %v261 = vadd.f32 0.0, %v260
    %v262 = vpop.f32.mrf.mxu0
    %263 = vmatprep.mubr.f32.mxu0 0.0
    %264 = vmatmul.mubr.f32.gmra.mxu0 %v175
    %v265 = vpop.f32.mrf.mxu0
    %v266 = vadd.f32 0.0, %v265
    %v267 = vpop.f32.mrf.mxu0
    %268 = vdwg.mxu0
    %v269 = vadd.f32 %v176, %v261
    %v270 = vadd.f32 %v177, %v266
    %271 = vst [vmem:[#allocation2] sm:$0xff] %v269
    %272 = vst [vmem:[#allocation2 + $0x8] sm:$0xff] %v270
    // Predicated region
    $region46: #{tpu_custom_call.1} parent=1 // pred_check
      %p273 = pneg %p68
    $region47: #{tpu_custom_call.1} parent=1 // pred_check_branch
      %275 = sbr.rel (%p273) target = $region49
    $region48: #{tpu_custom_call.1} parent=1 // pred_region
      %v276 = vld [vmem:[#allocation2] sm:$0xff]
      %v277 = vld [vmem:[#allocation2 + $0x8] sm:$0xff]
      %v278 = vld [vmem:[%s4] sm:$0x1]
      %v280 = vlaneseq
      %v281 = vshrl.u32 %v280, 7
      %v282 = vsub.s32 0, %v281
      %v283 = vrot.slane %v278, %v282
      %v285 = vadd.f32 %v276, %v283
      %v286 = vadd.f32 %v277, %v283
      %v287 = vld [vmem:[#allocation3] sm:$0xff]
      %v288 = vld [vmem:[#allocation3 + $0x8] sm:$0xff]
      %v289 = vadd.f32 %v285, %v287
      %v290 = vadd.f32 %v286, %v288
      %v291 = vlaneseq
      %v292 = vand.u32 %v291, 127
      %vm293 = vcmp.lt.s32.totalorder %v292, 32
      %v294 = vsel %vm293, %v289, 0.0
      %v295 = vsel %vm293, %v290, 0.0
      %296 = vadd.xlane.f32.xlu0 %v294
      %v297 = vpop.xlane.xlu0 %296
      %298 = vadd.xlane.f32.xlu0 %v295
      %v299 = vpop.xlane.xlu0 %298
      %v300 = vmul.f32 %v297, 0.03125
      %v301 = vmul.f32 %v299, 0.03125
      %v302 = vsub.f32 %v294, %v300
      %v303 = vsub.f32 %v295, %v301
      %v304 = vsel %vm293, %v302, 0.0
      %v305 = vsel %vm293, %v303, 0.0
      %v306 = vmul.f32 %v304, %v304
      %v307 = vmul.f32 %v305, %v305
      %308 = vadd.xlane.f32.xlu0 %v306
      %v309 = vpop.xlane.xlu0 %308
      %310 = vadd.xlane.f32.xlu0 %v307
      %v311 = vpop.xlane.xlu0 %310
      %v312 = vmul.f32 %v309, 0.03125
      %v313 = vmul.f32 %v311, 0.03125
      %v314 = vadd.f32 %v312, 1e-06
      %v315 = vadd.f32 %v313, 1e-06
      %v316 = vrsqrt.pop %v314
      %v317 = vrsqrt.pop %v315
      %v318 = vmul.f32 %v304, %v316
      %v319 = vmul.f32 %v305, %v317
      %v320 = vld [vmem:[%s5] sm:$0x1]
      %v322 = vlaneseq
      %v323 = vshrl.u32 %v322, 7
      %v324 = vsub.s32 0, %v323
      %v325 = vrot.slane %v320, %v324
      %v327 = vmul.f32 %v318, %v325
      %v328 = vmul.f32 %v319, %v325
      %v329 = vld [vmem:[%s6] sm:$0x1]
      %v331 = vlaneseq
      %v332 = vshrl.u32 %v331, 7
      %v333 = vsub.s32 0, %v332
      %v334 = vrot.slane %v329, %v333
      %v336 = vadd.f32 %v327, %v334
      %v337 = vadd.f32 %v328, %v334
      %338 = vst [vmem:[#allocation9] sm:$0xff] %v336
      %339 = vst [vmem:[#allocation9 + $0x8] sm:$0xff] %v337
    $region49: #{tpu_custom_call.1} parent=1 // pred_fallthru
      _
    // Predicated region
    $region50: #{tpu_custom_call.1} parent=1 // pred_check
      _
    $region51: #{tpu_custom_call.1} parent=1 // pred_check_branch
      %341 = sbr.rel (0) target = $region53
    $region52: #{tpu_custom_call.1} parent=1 // pred_region
      %s343 = ssub.s32 256, 256
      %344 = vsyncadd [#allocation5], %s343
      %s345 = sshll.u32 [#allocation9], 4
      %s346 = int_to_ptr.vmem [resolvable:$true] %s345
      %351 = dma.vmem_to_hbm [thread:$0]  %s346, 256, %s7, [#allocation5], 128, 128, 8
    $region53: #{tpu_custom_call.1} parent=1 // pred_fallthru
      _
    // Predicated region
    $region54: #{tpu_custom_call.1} parent=1 // pred_check
      _
    $region55: #{tpu_custom_call.1} parent=1 // pred_check_branch
      %353 = sbr.rel (0) target = $region57
    $region56: #{tpu_custom_call.1} parent=1 // pred_region
      %354 = dma.done [#allocation5], 256
    $region57: #{tpu_custom_call.1} parent=1 // pred_fallthru
      _
    %355 = vsyncpa [#allocation4], 1
    %356 = vsyncpa [#allocation7], 1
    %357 = vsyncpa [#allocation5], 1

// kernel: tpu_custom_call.1
$region0: #{tpu_custom_call.1}
  #allocation0 [shape = 'u32[]', space=smem, size = 0x4, offset = 0x4, fixed_abs, tag = 'smem constant byte address 0x4 - core index']
  #allocation1 [shape = 'u32[144,128]{1,0:T(1,128)}', space=vmem, size = 0x12000, scoped, tag = 'internal scratch']
  #allocation2 [shape = 'f32[16,128]{1,0:T(8,128)}', space=vmem, size = 0x2000, scoped, tag = 'scratch operand']
  %s0 = inlined_call_operand.hbm [shape: f32[16,128], index: 0, kind: input, shape index: {}]
  %s1 = inlined_call_operand.hbm [shape: f32[128,128], index: 1, kind: input, shape index: {}]
  %s2 = inlined_call_operand.vmem [shape: f32[1,128], index: 2, kind: input, shape index: {}]
  %s3 = inlined_call_operand.hbm [shape: f32[128,128], index: 3, kind: input, shape index: {}]
  %s4 = inlined_call_operand.vmem [shape: f32[1,128], index: 4, kind: input, shape index: {}]
  %s5 = inlined_call_operand.vmem [shape: f32[1,128], index: 5, kind: input, shape index: {}]
  %s6 = inlined_call_operand.vmem [shape: f32[1,128], index: 6, kind: input, shape index: {}]
  %s7 = inlined_call_operand.hbm [shape: f32[16,128], index: 7, kind: output, shape index: {}]
  %s8 = sld [smem:[#allocation0]]
  $region58: #{tpu_custom_call.1} parent=0
    _
  %s10 = ssub.s32 1, %s8
  %s11 = scalar_select 0, %s10, %s8
  $region1: #{tpu_custom_call.1} parent=0
    #allocation3 [shape = 'u8[8192]{0}', space=vmem, size = 0x2000, scoped, tag = 'input window, operand 0, single buffered']
    #allocation4 [shape = 's32[1]{0}', space=sflag, size = 0x4, scoped, tag = 'scoped memory for tpu_custom_call.1']
    #allocation5 [shape = 's32[1]{0}', space=sflag, size = 0x4, scoped, tag = 'scoped memory for tpu_custom_call.1']
    #allocation6 [shape = 'u8[65536]{0}', space=vmem, size = 0x10000, scoped, tag = 'input window, operand 1, single buffered']
    #allocation7 [shape = 's32[1]{0}', space=sflag, size = 0x4, scoped, tag = 'scoped memory for tpu_custom_call.1']
    #allocation8 [shape = 'u8[65536]{0}', space=vmem, size = 0x10000, scoped, tag = 'input window, operand 3, single buffered']
    #allocation9 [shape = 'u8[8192]{0}', space=vmem, size = 0x2000, scoped, tag = 'output window, operand 0, single buffered']
    %12 = vsyncpa [#allocation4], 0
    %13 = vsyncpa [#allocation7], 0
    %14 = vsyncpa [#allocation5], 0
    // Predicated region
    $region2: #{tpu_custom_call.1} parent=1 // pred_check
      _
    $region3: #{tpu_custom_call.1} parent=1 // pred_check_branch
      %16 = sbr.rel (0) target = $region5
    $region4: #{tpu_custom_call.1} parent=1 // pred_region
      %s18 = ssub.s32 256, 256
      %19 = vsyncadd [#allocation4], %s18
      %s20 = sshll.u32 [#allocation3], 4
      %s21 = int_to_ptr.vmem [resolvable:$true] %s20
      %26 = dma.hbm_to_vmem [thread:$0]  %s0, 256, %s21, [#allocation4], 128, 128, 8
    $region5: #{tpu_custom_call.1} parent=1 // pred_fallthru
      _
    // Predicated region
    $region6: #{tpu_custom_call.1} parent=1 // pred_check
      _
    $region7: #{tpu_custom_call.1} parent=1 // pred_check_branch
      %28 = sbr.rel (0) target = $region9
    $region8: #{tpu_custom_call.1} parent=1 // pred_region
      %s30 = ssub.s32 2048, 2048
      %31 = vsyncadd [#allocation7], %s30
      %s32 = sshll.u32 [#allocation6], 4
      %s33 = int_to_ptr.vmem [resolvable:$true] %s32
      %38 = dma.hbm_to_vmem [thread:$0]  %s1, 2048, %s33, [#allocation7], 128, 128, 8
    $region9: #{tpu_custom_call.1} parent=1 // pred_fallthru
      _
    // Predicated region
    $region10: #{tpu_custom_call.1} parent=1 // pred_check
      _
    $region11: #{tpu_custom_call.1} parent=1 // pred_check_branch
      %40 = sbr.rel (0) target = $region13
    $region12: #{tpu_custom_call.1} parent=1 // pred_region
      _
    $region13: #{tpu_custom_call.1} parent=1 // pred_fallthru
      _
    // Predicated region
    $region14: #{tpu_custom_call.1} parent=1 // pred_check
      _
    $region15: #{tpu_custom_call.1} parent=1 // pred_check_branch
      %42 = sbr.rel (0) target = $region17
    $region16: #{tpu_custom_call.1} parent=1 // pred_region
      %s44 = ssub.s32 2048, 2048
      %45 = vsyncadd [#allocation7], %s44
      %s46 = sshll.u32 [#allocation8], 4
      %s47 = int_to_ptr.vmem [resolvable:$true] %s46
      %52 = dma.hbm_to_vmem [thread:$0]  %s3, 2048, %s47, [#allocation7], 128, 128, 8
    $region17: #{tpu_custom_call.1} parent=1 // pred_fallthru
      _
    // Predicated region
    $region18: #{tpu_custom_call.1} parent=1 // pred_check
      _
    $region19: #{tpu_custom_call.1} parent=1 // pred_check_branch
      %54 = sbr.rel (0) target = $region21
    $region20: #{tpu_custom_call.1} parent=1 // pred_region
      _
    $region21: #{tpu_custom_call.1} parent=1 // pred_fallthru
      _
    // Predicated region
    $region22: #{tpu_custom_call.1} parent=1 // pred_check
      _
    $region23: #{tpu_custom_call.1} parent=1 // pred_check_branch
      %56 = sbr.rel (0) target = $region25
    $region24: #{tpu_custom_call.1} parent=1 // pred_region
      _
    $region25: #{tpu_custom_call.1} parent=1 // pred_fallthru
      _
    // Predicated region
    $region26: #{tpu_custom_call.1} parent=1 // pred_check
      _
    $region27: #{tpu_custom_call.1} parent=1 // pred_check_branch
      %58 = sbr.rel (0) target = $region29
    $region28: #{tpu_custom_call.1} parent=1 // pred_region
      _
    $region29: #{tpu_custom_call.1} parent=1 // pred_fallthru
      _
    // Predicated region
    $region30: #{tpu_custom_call.1} parent=1 // pred_check
      _
    $region31: #{tpu_custom_call.1} parent=1 // pred_check_branch
      %60 = sbr.rel (0) target = $region33
    $region32: #{tpu_custom_call.1} parent=1 // pred_region
      %61 = dma.done [#allocation4], 256
    $region33: #{tpu_custom_call.1} parent=1 // pred_fallthru
      _
    // Predicated region
    $region34: #{tpu_custom_call.1} parent=1 // pred_check
      _
    $region35: #{tpu_custom_call.1} parent=1 // pred_check_branch
      %63 = sbr.rel (0) target = $region37
    $region36: #{tpu_custom_call.1} parent=1 // pred_region
      %64 = dma.done [#allocation7], 2048
    $region37: #{tpu_custom_call.1} parent=1 // pred_fallthru
      _
    // Predicated region
    $region38: #{tpu_custom_call.1} parent=1 // pred_check
      _
    $region39: #{tpu_custom_call.1} parent=1 // pred_check_branch
      %66 = sbr.rel (0) target = $region41
    $region40: #{tpu_custom_call.1} parent=1 // pred_region
      %67 = dma.done [#allocation7], 2048
    $region41: #{tpu_custom_call.1} parent=1 // pred_fallthru
      _
    %p68 = scmp.eq.s32.totalorder 0, 0
    // Predicated region
    $region42: #{tpu_custom_call.1} parent=1 // pred_check
      %p69 = pneg %p68
    $region43: #{tpu_custom_call.1} parent=1 // pred_check_branch
      %71 = sbr.rel (%p69) target = $region45
    $region44: #{tpu_custom_call.1} parent=1 // pred_region
      %72 = vst [vmem:[#allocation2] sm:$0xff] 0.0
      %73 = vst [vmem:[#allocation2 + $0x8] sm:$0xff] 0.0
    $region45: #{tpu_custom_call.1} parent=1 // pred_fallthru
      _
    %v74 = vld [vmem:[#allocation3] sm:$0xff]
    %v75 = vld [vmem:[#allocation3 + $0x8] sm:$0xff]
    %v76 = vld [vmem:[#allocation6] sm:$0xff]
    %v77 = vld [vmem:[#allocation6 + $0x8] sm:$0xff]
    %v78 = vld [vmem:[#allocation6 + $0x10] sm:$0xff]
    %v79 = vld [vmem:[#allocation6 + $0x18] sm:$0xff]
    %v80 = vld [vmem:[#allocation6 + $0x20] sm:$0xff]
    %v81 = vld [vmem:[#allocation6 + $0x28] sm:$0xff]
    %v82 = vld [vmem:[#allocation6 + $0x30] sm:$0xff]
    %v83 = vld [vmem:[#allocation6 + $0x38] sm:$0xff]
    %v84 = vld [vmem:[#allocation6 + $0x40] sm:$0xff]
    %v85 = vld [vmem:[#allocation6 + $0x48] sm:$0xff]
    %v86 = vld [vmem:[#allocation6 + $0x50] sm:$0xff]
    %v87 = vld [vmem:[#allocation6 + $0x58] sm:$0xff]
    %v88 = vld [vmem:[#allocation6 + $0x60] sm:$0xff]
    %v89 = vld [vmem:[#allocation6 + $0x68] sm:$0xff]
    %v90 = vld [vmem:[#allocation6 + $0x70] sm:$0xff]
    %v91 = vld [vmem:[#allocation6 + $0x78] sm:$0xff]
    %v92 = vld [vmem:[%s2] sm:$0x1]
    %v94 = vlaneseq
    %v95 = vshrl.u32 %v94, 7
    %v96 = vsub.s32 0, %v95
    %v97 = vrot.slane %v92, %v96
    %99 = vmatprep.subr.mxu0 0.0
    %100 = vmatpush1.msra.mxu0 %v91
    %101 = vmatprep.subr.mxu0 0.0
    %102 = vmatpush1.msra.mxu0 %v90
    %103 = vmatprep.subr.mxu0 0.0
    %104 = vmatpush1.msra.mxu0 %v89
    %105 = vmatprep.subr.mxu0 0.0
    %106 = vmatpush1.msra.mxu0 %v88
    %107 = vmatprep.subr.mxu0 0.0
    %108 = vmatpush1.msra.mxu0 %v87
    %109 = vmatprep.subr.mxu0 0.0
    %110 = vmatpush1.msra.mxu0 %v86
    %111 = vmatprep.subr.mxu0 0.0
    %112 = vmatpush1.msra.mxu0 %v85
    %113 = vmatprep.subr.mxu0 0.0
    %114 = vmatpush1.msra.mxu0 %v84
    %115 = vmatprep.subr.mxu0 0.0
    %116 = vmatpush1.msra.mxu0 %v83
    %117 = vmatprep.subr.mxu0 0.0
    %118 = vmatpush1.msra.mxu0 %v82
    %119 = vmatprep.subr.mxu0 0.0
    %120 = vmatpush1.msra.mxu0 %v81
    %121 = vmatprep.subr.mxu0 0.0
    %122 = vmatpush1.msra.mxu0 %v80
    %123 = vmatprep.subr.mxu0 0.0
    %124 = vmatpush1.msra.mxu0 %v79
    %125 = vmatprep.subr.mxu0 0.0
    %126 = vmatpush1.msra.mxu0 %v78
    %127 = vmatprep.subr.mxu0 0.0
    %128 = vmatpush1.msra.mxu0 %v77
    %129 = vmatprep.subr.mxu0 0.0
    %130 = vmatpush1.msra.mxu0 %v76
    %131 = vmatprep.subr.mxu0 0.0
    %132 = vmatpush2.msra.mxu0 0.0
    %133 = vmatprep.subr.mxu0 0.0
    %134 = vmatpush2.msra.mxu0 0.0
    %135 = vmatprep.subr.mxu0 0.0
    %136 = vmatpush2.msra.mxu0 0.0
    %137 = vmatprep.subr.mxu0 0.0
    %138 = vmatpush2.msra.mxu0 0.0
    %139 = vmatprep.subr.mxu0 0.0
    %140 = vmatpush2.msra.mxu0 0.0
    %141 = vmatprep.subr.mxu0 0.0
    %142 = vmatpush2.msra.mxu0 0.0
    %143 = vmatprep.subr.mxu0 0.0
    %144 = vmatpush2.msra.mxu0 0.0
    %145 = vmatprep.subr.mxu0 0.0
    %146 = vmatpush2.msra.mxu0 0.0
    %147 = vmatprep.subr.mxu0 0.0
    %148 = vmatpush2.msra.mxu0 0.0
    %149 = vmatprep.subr.mxu0 0.0
    %150 = vmatpush2.msra.mxu0 0.0
    %151 = vmatprep.subr.mxu0 0.0
    %152 = vmatpush2.msra.mxu0 0.0
    %153 = vmatprep.subr.mxu0 0.0
    %154 = vmatpush2.msra.mxu0 0.0
    %155 = vmatprep.subr.mxu0 0.0
    %156 = vmatpush2.msra.mxu0 0.0
    %157 = vmatprep.subr.mxu0 0.0
    %158 = vmatpush2.msra.mxu0 0.0
    %159 = vmatprep.subr.mxu0 0.0
    %160 = vmatpush2.msra.mxu0 0.0
    %161 = vmatprep.subr.mxu0 0.0
    %162 = vmatpush2.msra.mxu0 0.0
    %163 = vmatprep.mubr.f32.mxu0 0.0
    %164 = vmatmul.mubr.f32.gmra.mxu0 %v74
    %v165 = vpop.f32.mrf.mxu0
    %v166 = vadd.f32 %v97, %v165
    %v167 = vpop.f32.mrf.mxu0
    %168 = vmatprep.mubr.f32.mxu0 0.0
    %169 = vmatmul.mubr.f32.gmra.mxu0 %v75
    %v170 = vpop.f32.mrf.mxu0
    %v171 = vadd.f32 %v97, %v170
    %v172 = vpop.f32.mrf.mxu0
    %173 = vdwg.mxu0
    %v174 = vmax.f32 %v166, 0.0
    %v175 = vmax.f32 %v171, 0.0
    %v176 = vld [vmem:[#allocation2] sm:$0xff]
    %v177 = vld [vmem:[#allocation2 + $0x8] sm:$0xff]
    %v178 = vld [vmem:[#allocation8] sm:$0xff]
    %v179 = vld [vmem:[#allocation8 + $0x8] sm:$0xff]
    %v180 = vld [vmem:[#allocation8 + $0x10] sm:$0xff]
    %v181 = vld [vmem:[#allocation8 + $0x18] sm:$0xff]
    %v182 = vld [vmem:[#allocation8 + $0x20] sm:$0xff]
    %v183 = vld [vmem:[#allocation8 + $0x28] sm:$0xff]
    %v184 = vld [vmem:[#allocation8 + $0x30] sm:$0xff]
    %v185 = vld [vmem:[#allocation8 + $0x38] sm:$0xff]
    %v186 = vld [vmem:[#allocation8 + $0x40] sm:$0xff]
    %v187 = vld [vmem:[#allocation8 + $0x48] sm:$0xff]
    %v188 = vld [vmem:[#allocation8 + $0x50] sm:$0xff]
    %v189 = vld [vmem:[#allocation8 + $0x58] sm:$0xff]
    %v190 = vld [vmem:[#allocation8 + $0x60] sm:$0xff]
    %v191 = vld [vmem:[#allocation8 + $0x68] sm:$0xff]
    %v192 = vld [vmem:[#allocation8 + $0x70] sm:$0xff]
    %v193 = vld [vmem:[#allocation8 + $0x78] sm:$0xff]
    %194 = vmatprep.subr.mxu0 0.0
    %195 = vmatpush1.msra.mxu0 %v193
    %196 = vmatprep.subr.mxu0 0.0
    %197 = vmatpush1.msra.mxu0 %v192
    %198 = vmatprep.subr.mxu0 0.0
    %199 = vmatpush1.msra.mxu0 %v191
    %200 = vmatprep.subr.mxu0 0.0
    %201 = vmatpush1.msra.mxu0 %v190
    %202 = vmatprep.subr.mxu0 0.0
    %203 = vmatpush1.msra.mxu0 %v189
    %204 = vmatprep.subr.mxu0 0.0
    %205 = vmatpush1.msra.mxu0 %v188
    %206 = vmatprep.subr.mxu0 0.0
    %207 = vmatpush1.msra.mxu0 %v187
    %208 = vmatprep.subr.mxu0 0.0
    %209 = vmatpush1.msra.mxu0 %v186
    %210 = vmatprep.subr.mxu0 0.0
    %211 = vmatpush1.msra.mxu0 %v185
    %212 = vmatprep.subr.mxu0 0.0
    %213 = vmatpush1.msra.mxu0 %v184
    %214 = vmatprep.subr.mxu0 0.0
    %215 = vmatpush1.msra.mxu0 %v183
    %216 = vmatprep.subr.mxu0 0.0
    %217 = vmatpush1.msra.mxu0 %v182
    %218 = vmatprep.subr.mxu0 0.0
    %219 = vmatpush1.msra.mxu0 %v181
    %220 = vmatprep.subr.mxu0 0.0
    %221 = vmatpush1.msra.mxu0 %v180
    %222 = vmatprep.subr.mxu0 0.0
    %223 = vmatpush1.msra.mxu0 %v179
    %224 = vmatprep.subr.mxu0 0.0
    %225 = vmatpush1.msra.mxu0 %v178
    %226 = vmatprep.subr.mxu0 0.0
    %227 = vmatpush2.msra.mxu0 0.0
    %228 = vmatprep.subr.mxu0 0.0
    %229 = vmatpush2.msra.mxu0 0.0
    %230 = vmatprep.subr.mxu0 0.0
    %231 = vmatpush2.msra.mxu0 0.0
    %232 = vmatprep.subr.mxu0 0.0
    %233 = vmatpush2.msra.mxu0 0.0
    %234 = vmatprep.subr.mxu0 0.0
    %235 = vmatpush2.msra.mxu0 0.0
    %236 = vmatprep.subr.mxu0 0.0
    %237 = vmatpush2.msra.mxu0 0.0
    %238 = vmatprep.subr.mxu0 0.0
    %239 = vmatpush2.msra.mxu0 0.0
    %240 = vmatprep.subr.mxu0 0.0
    %241 = vmatpush2.msra.mxu0 0.0
    %242 = vmatprep.subr.mxu0 0.0
    %243 = vmatpush2.msra.mxu0 0.0
    %244 = vmatprep.subr.mxu0 0.0
    %245 = vmatpush2.msra.mxu0 0.0
    %246 = vmatprep.subr.mxu0 0.0
    %247 = vmatpush2.msra.mxu0 0.0
    %248 = vmatprep.subr.mxu0 0.0
    %249 = vmatpush2.msra.mxu0 0.0
    %250 = vmatprep.subr.mxu0 0.0
    %251 = vmatpush2.msra.mxu0 0.0
    %252 = vmatprep.subr.mxu0 0.0
    %253 = vmatpush2.msra.mxu0 0.0
    %254 = vmatprep.subr.mxu0 0.0
    %255 = vmatpush2.msra.mxu0 0.0
    %256 = vmatprep.subr.mxu0 0.0
    %257 = vmatpush2.msra.mxu0 0.0
    %258 = vmatprep.mubr.f32.mxu0 0.0
    %259 = vmatmul.mubr.f32.gmra.mxu0 %v174
    %v260 = vpop.f32.mrf.mxu0
    %v261 = vadd.f32 0.0, %v260
    %v262 = vpop.f32.mrf.mxu0
    %263 = vmatprep.mubr.f32.mxu0 0.0
    %264 = vmatmul.mubr.f32.gmra.mxu0 %v175
    %v265 = vpop.f32.mrf.mxu0
    %v266 = vadd.f32 0.0, %v265
    %v267 = vpop.f32.mrf.mxu0
    %268 = vdwg.mxu0
    %v269 = vadd.f32 %v176, %v261
    %v270 = vadd.f32 %v177, %v266
    %271 = vst [vmem:[#allocation2] sm:$0xff] %v269
    %272 = vst [vmem:[#allocation2 + $0x8] sm:$0xff] %v270
    // Predicated region
    $region46: #{tpu_custom_call.1} parent=1 // pred_check
      %p273 = pneg %p68
    $region47: #{tpu_custom_call.1} parent=1 // pred_check_branch
      %275 = sbr.rel (%p273) target = $region49
    $region48: #{tpu_custom_call.1} parent=1 // pred_region
      %v276 = vld [vmem:[#allocation2] sm:$0xff]
      %v277 = vld [vmem:[#allocation2 + $0x8] sm:$0xff]
      %v278 = vld [vmem:[%s4] sm:$0x1]
      %v280 = vlaneseq
      %v281 = vshrl.u32 %v280, 7
      %v282 = vsub.s32 0, %v281
      %v283 = vrot.slane %v278, %v282
      %v285 = vadd.f32 %v276, %v283
      %v286 = vadd.f32 %v277, %v283
      %v287 = vld [vmem:[#allocation3] sm:$0xff]
      %v288 = vld [vmem:[#allocation3 + $0x8] sm:$0xff]
      %v289 = vadd.f32 %v285, %v287
      %v290 = vadd.f32 %v286, %v288
      %v291 = vlaneseq
      %v292 = vand.u32 %v291, 127
      %vm293 = vcmp.lt.s32.totalorder %v292, 32
      %v294 = vsel %vm293, %v289, 0.0
      %v295 = vsel %vm293, %v290, 0.0
      %296 = vadd.xlane.f32.xlu0 %v294
      %v297 = vpop.xlane.xlu0 %296
      %298 = vadd.xlane.f32.xlu0 %v295
      %v299 = vpop.xlane.xlu0 %298
      %v300 = vmul.f32 %v297, 0.03125
      %v301 = vmul.f32 %v299, 0.03125
      %v302 = vsub.f32 %v294, %v300
      %v303 = vsub.f32 %v295, %v301
      %v304 = vsel %vm293, %v302, 0.0
      %v305 = vsel %vm293, %v303, 0.0
      %v306 = vmul.f32 %v304, %v304
      %v307 = vmul.f32 %v305, %v305
      %308 = vadd.xlane.f32.xlu0 %v306
      %v309 = vpop.xlane.xlu0 %308
      %310 = vadd.xlane.f32.xlu0 %v307
      %v311 = vpop.xlane.xlu0 %310
      %v312 = vmul.f32 %v309, 0.03125
      %v313 = vmul.f32 %v311, 0.03125
      %v314 = vadd.f32 %v312, 1e-06
      %v315 = vadd.f32 %v313, 1e-06
      %v316 = vrsqrt.pop %v314
      %v317 = vrsqrt.pop %v315
      %v318 = vmul.f32 %v304, %v316
      %v319 = vmul.f32 %v305, %v317
      %v320 = vld [vmem:[%s5] sm:$0x1]
      %v322 = vlaneseq
      %v323 = vshrl.u32 %v322, 7
      %v324 = vsub.s32 0, %v323
      %v325 = vrot.slane %v320, %v324
      %v327 = vmul.f32 %v318, %v325
      %v328 = vmul.f32 %v319, %v325
      %v329 = vld [vmem:[%s6] sm:$0x1]
      %v331 = vlaneseq
      %v332 = vshrl.u32 %v331, 7
      %v333 = vsub.s32 0, %v332
      %v334 = vrot.slane %v329, %v333
      %v336 = vadd.f32 %v327, %v334
      %v337 = vadd.f32 %v328, %v334
      %338 = vst [vmem:[#allocation9] sm:$0xff] %v336
      %339 = vst [vmem:[#allocation9 + $0x8] sm:$0xff] %v337
    $region49: #{tpu_custom_call.1} parent=1 // pred_fallthru
      _
    // Predicated region
    $region50: #{tpu_custom_call.1} parent=1 // pred_check
      _
    $region51: #{tpu_custom_call.1} parent=1 // pred_check_branch
      %341 = sbr.rel (0) target = $region53
    $region52: #{tpu_custom_call.1} parent=1 // pred_region
      %s343 = ssub.s32 256, 256
      %344 = vsyncadd [#allocation5], %s343
      %s345 = sshll.u32 [#allocation9], 4
      %s346 = int_to_ptr.vmem [resolvable:$true] %s345
      %351 = dma.vmem_to_hbm [thread:$0]  %s346, 256, %s7, [#allocation5], 128, 128, 8
    $region53: #{tpu_custom_call.1} parent=1 // pred_fallthru
      _
    // Predicated region
    $region54: #{tpu_custom_call.1} parent=1 // pred_check
      _
    $region55: #{tpu_custom_call.1} parent=1 // pred_check_branch
      %353 = sbr.rel (0) target = $region57
    $region56: #{tpu_custom_call.1} parent=1 // pred_region
      %354 = dma.done [#allocation5], 256
    $region57: #{tpu_custom_call.1} parent=1 // pred_fallthru
      _
    %355 = vsyncpa [#allocation4], 1
    %356 = vsyncpa [#allocation7], 1
    %357 = vsyncpa [#allocation5], 1

</llo_original>
